<compile_context>
chip_gen: v7x
topology: tpu7x:2x2x1
jax: 0.10.0
libtpu: 0.0.40
codegen_flags: <defaults>
</compile_context>

<pallas_src>
import functools

import jax
import jax.numpy as jnp
from jax.experimental import pallas as pl
from jax.experimental.pallas import tpu as pltpu


_TARGET_BLOCK_BYTES = 4 << 20       # ~4 MiB per block
_TARGET_GRID_STEPS = 8              # aim for >= ~8 grid steps (pipelining / 2 TCs)
_VMEM_LIMIT_BYTES = 48 << 20        # < 64 MiB physical VMEM on v7x
_COL_CANDIDATES = (2048, 1024, 512, 256, 128)   # lane-dense widths (x128)
_MIN_KERNEL_ELEMS = 1024            # below this, dispatch overhead dominates


def _cdiv(a, b):
    return -(-a // b)


def _round_up(a, b):
    return _cdiv(a, b) * b


def _make_norm_kernel(mean_f, inv_std):
    # mean_f / inv_std are Python floats folded into the kernel body:
    # no SMEM input, no per-element divide (2 VALU ops, hidden under DMA).
    def _kernel(x_ref, o_ref):
        o_ref[...] = (x_ref[...] - mean_f) * inv_std
    return _kernel


@functools.partial(jax.jit, static_argnames=("mean", "std"))
def precomputed_norm(x: jax.Array, mean, std) -> jax.Array:
    """(x - mean) / std with precomputed scalar stats (PrecomputedNorm.forward).

    Float inputs keep their dtype; integer inputs are promoted to float32
    (matching PyTorch's tensor/scalar promotion).
    """
    orig_shape = x.shape
    n = x.size

    if jnp.issubdtype(x.dtype, jnp.floating):
        compute_dtype = x.dtype
    else:
        compute_dtype = jnp.float32

    mean_f = float(mean)
    inv_std = float(1.0 / float(std))

    # Flatten: reshape of a contiguous array is a free bitcast; astype is a
    # no-op for float inputs.
    x_flat = x.reshape(-1).astype(compute_dtype)

    # Fallback path: tiny tensors or element counts not divisible by 128.
    # A single fused XLA elementwise pass is already HBM-roofline here and
    # avoids any pad / slice / concat copies.
    if n < _MIN_KERNEL_ELEMS or n % 128 != 0:
        return ((x_flat - mean_f) * inv_std).reshape(orig_shape)

    # Widest lane-dense column count that divides n exactly -> the 2-D view
    # is a free bitcast and the output needs no trimming.
    cols = next(c for c in _COL_CANDIDATES if n % c == 0)
    rows = n // cols
    x2d = x_flat.reshape(rows, cols)

    itemsize = jnp.dtype(compute_dtype).itemsize
    sublane = max(8, 32 // itemsize)     # 8 (f32) / 16 (bf16,f16) / 32 (int8/fp8)

    if rows < sublane:
        # Tiny slab: block == full array dims (always a legal block shape).
        tm = rows
    else:
        # Row tile: large enough for ~4 MiB blocks, small enough to give the
        # grid ~TARGET_GRID_STEPS steps; aligned to the dtype's sublane pack.
        tm_cap = max(sublane,
                     _round_up(_cdiv(_TARGET_BLOCK_BYTES // itemsize, cols), sublane))
        tm = max(sublane, _round_up(_cdiv(rows, _TARGET_GRID_STEPS), sublane))
        tm = min(tm, tm_cap)

    # Last block may be partial (rows % tm != 0): Pallas clips the DMA, so
    # out-of-bounds reads feed only discarded outputs and OOB writes drop.
    grid = (_cdiv(rows, tm),)

    out2d = pl.pallas_call(
        _make_norm_kernel(mean_f, inv_std),
        out_shape=jax.ShapeDtypeStruct((rows, cols), compute_dtype),
        grid=grid,
        in_specs=[pl.BlockSpec((tm, cols), lambda i: (i, 0))],
        out_specs=pl.BlockSpec((tm, cols), lambda i: (i, 0)),
        compiler_params=pltpu.CompilerParams(
            dimension_semantics=("parallel",),
            vmem_limit_bytes=_VMEM_LIMIT_BYTES,
        ),
        cost_estimate=pl.CostEstimate(
            flops=2 * n,
            transcendentals=0,
            bytes_accessed=2 * n * itemsize,
        ),
    )(x2d)

    return out2d.reshape(orig_shape)


if __name__ == "__main__":
    MEAN = 0.5
    STD = 2.0

    # Primary NCHW-style input (2*4*16*16 = 2048 elements -> Pallas path,
    # single full-width block).
    x = jax.random.normal(jax.random.PRNGKey(0), (2, 4, 16, 16), dtype=jnp.float32)
    y = jax.block_until_ready(precomputed_norm(x, mean=MEAN, std=STD))
    y_ref = (x - MEAN) / STD
    assert y.shape == x.shape and y.dtype == x.dtype
    assert jnp.allclose(y, y_ref, atol=1e-6, rtol=1e-6)

    # Larger f32 input -> multi-step pipelined grid (rows divisible by tile).
    x_big = jax.random.normal(jax.random.PRNGKey(1), (8, 3, 64, 64), dtype=jnp.float32)
    y_big = jax.block_until_ready(precomputed_norm(x_big, mean=MEAN, std=STD))
    assert jnp.allclose(y_big, (x_big - MEAN) / STD, atol=1e-6, rtol=1e-6)

    # Row count not a multiple of the tile -> exercises the partial last block.
    x_rag = jax.random.normal(jax.random.PRNGKey(2), (21, 16, 128), dtype=jnp.float32)
    y_rag = jax.block_until_ready(precomputed_norm(x_rag, mean=MEAN, std=STD))
    assert jnp.allclose(y_rag, (x_rag - MEAN) / STD, atol=1e-6, rtol=1e-6)

    # bf16 input exercises the 16-sublane alignment path and dtype preservation.
    x_bf = jax.random.normal(jax.random.PRNGKey(3), (2, 8, 16, 16), dtype=jnp.bfloat16)
    y_bf = jax.block_until_ready(precomputed_norm(x_bf, mean=MEAN, std=STD))
    y_bf_ref = (x_bf - MEAN) / STD
    assert y_bf.dtype == jnp.bfloat16
    assert jnp.allclose(y_bf.astype(jnp.float32), y_bf_ref.astype(jnp.float32),
                        atol=2e-2, rtol=2e-2)

    # Odd-sized input (3*5*7 = 105, not a multiple of 128) -> jnp fallback,
    # still matching module semantics.
    x_odd = jax.random.normal(jax.random.PRNGKey(4), (3, 5, 7), dtype=jnp.float32)
    y_odd = jax.block_until_ready(precomputed_norm(x_odd, mean=MEAN, std=STD))
    assert jnp.allclose(y_odd, (x_odd - MEAN) / STD, atol=1e-6, rtol=1e-6)

    print("KERNEL_OK")
</pallas_src>

<mosaic_0001>
module attributes {stable_mosaic.version = 11 : i64} {
  func.func @_kernel(%arg0: i32, %arg1: memref<1x2048xf32, #tpu.memory_space<vmem>>, %arg2: memref<1x2048xf32, #tpu.memory_space<vmem>>) attributes {dimension_semantics = [#tpu.dimension_semantics<parallel>], iteration_bounds = array<i64: 1>, scalar_prefetch = 0 : i64, scratch_operands = 0 : i64, tpu.core_type = #tpu.core_type<tc>, window_params = [{transform_indices = @transform_0, window_bounds = array<i64: 1, 2048>}, {transform_indices = @transform_1, window_bounds = array<i64: 1, 2048>}]} {
    %c0 = arith.constant 0 : index
    %c0_0 = arith.constant 0 : index
    %0 = vector.load %arg1[%c0, %c0_0] : memref<1x2048xf32, #tpu.memory_space<vmem>>, vector<1x2048xf32>
    %cst = arith.constant 5.000000e-01 : f32
    %1 = vector.broadcast %cst : f32 to vector<1x2048xf32>
    %2 = arith.subf %0, %1 : vector<1x2048xf32>
    %cst_1 = arith.constant 5.000000e-01 : f32
    %3 = vector.broadcast %cst_1 : f32 to vector<1x2048xf32>
    %4 = arith.mulf %2, %3 : vector<1x2048xf32>
    %c0_2 = arith.constant 0 : index
    %c0_3 = arith.constant 0 : index
    %5 = vector.load %arg2[%c0_2, %c0_3] : memref<1x2048xf32, #tpu.memory_space<vmem>>, vector<1x2048xf32>
    tpu.vector_store %arg2[%c0_2, %c0_3], %4 {strides = array<i32>} : memref<1x2048xf32, #tpu.memory_space<vmem>>, vector<1x2048xf32>,
    return
  }
  func.func @transform_0(%arg0: i32) -> (i32, i32) {
    %c0_i32 = arith.constant 0 : i32
    %c0_i32_0 = arith.constant 0 : i32
    return %arg0, %c0_i32 : i32, i32
  }
  func.func @transform_1(%arg0: i32) -> (i32, i32) {
    %c0_i32 = arith.constant 0 : i32
    %c0_i32_0 = arith.constant 0 : i32
    return %arg0, %c0_i32 : i32, i32
  }
}

</mosaic_0001>

<llo_original>
// kernel: precomputed_norm.1
$region0: #{precomputed_norm.1}
  #allocation0 [shape = 'u32[]', space=smem, size = 0x4, offset = 0x4, fixed_abs, tag = 'smem constant byte address 0x4 - core index']
  #allocation1 [shape = 'u32[144,128]{1,0:T(1,128)}', space=vmem, size = 0x12000, scoped, tag = 'internal scratch']
  %s0 = inlined_call_operand.vmem [shape: f32[1,2048], index: 0, kind: input, shape index: {}]
  %s1 = inlined_call_operand.vmem [shape: f32[1,2048], index: 1, kind: output, shape index: {}]
  %s2 = sld [smem:[#allocation0]]
  $region14: #{precomputed_norm.1} parent=0
    _
  %s4 = ssub.s32 1, %s2
  %s5 = scalar_select 0, %s4, %s2
  // Predicated region
  $region2: #{precomputed_norm.1} parent=0 // pred_check
    _
  $region3: #{precomputed_norm.1} parent=0 // pred_check_branch
    %7 = sbr.rel (0) target = $region5
  $region4: #{precomputed_norm.1} parent=0 // pred_region
    _
  $region5: #{precomputed_norm.1} parent=0 // pred_fallthru
    _
  %v8 = vld [vmem:[%s0] sm:$0xff]
  %v9 = vld [vmem:[%s0 + $0x8] sm:$0xff]
  %v10 = vsub.f32 %v8, 0.5
  %v11 = vsub.f32 %v9, 0.5
  %v12 = vmul.f32 %v10, 0.5
  %v13 = vmul.f32 %v11, 0.5
  %14 = vst [vmem:[%s1] sm:$0xff] %v12
  %15 = vst [vmem:[%s1 + $0x8] sm:$0xff] %v13
  // Predicated region
  $region6: #{precomputed_norm.1} parent=0 // pred_check
    _
  $region7: #{precomputed_norm.1} parent=0 // pred_check_branch
    %17 = sbr.rel (0) target = $region9
  $region8: #{precomputed_norm.1} parent=0 // pred_region
    _
  $region9: #{precomputed_norm.1} parent=0 // pred_fallthru
    _
  // Predicated region
  $region10: #{precomputed_norm.1} parent=0 // pred_check
    _
  $region11: #{precomputed_norm.1} parent=0 // pred_check_branch
    %19 = sbr.rel (0) target = $region13
  $region12: #{precomputed_norm.1} parent=0 // pred_region
    _
  $region13: #{precomputed_norm.1} parent=0 // pred_fallthru
    _

</llo_original>
